<compile_context>
chip_gen: v5e
topology: v5e:2x2
jax: 0.10.0
libtpu: 0.0.40
codegen_flags: <defaults>
</compile_context>

<pallas_src>
import functools

import jax
import jax.numpy as jnp
from jax.experimental import pallas as pl
from jax.experimental.pallas import tpu as pltpu


def _edge_kernel(x_ref, out_ref, *, k):
    """One batch-tile per grid step.

    x_ref:   (bt, H, W)  0-1 image tile (any numeric dtype)
    out_ref: (bt, H, W)  edge map (out_dtype)
    """
    p = k // 2
    bt, H, W = x_ref.shape
    x = x_ref[...].astype(jnp.float32)      # exact for 0/1 sums on every generation

    # Small iotas; broadcasting does the rest inside the selects / compares.
    col = jax.lax.broadcasted_iota(jnp.int32, (1, 1, W), 2)
    row = jax.lax.broadcasted_iota(jnp.int32, (1, H, 1), 1)

    # Sum of the 2k-1 cross taps (center counted once).  Shifted taps come from
    # XLU rolls on the unpadded tile; wrapped border elements are masked to 0.
    s = x
    for off in range(1, p + 1):
        # ( 0, +off): value x[..., col+off], valid iff col < W - off
        s = s + jnp.where(col < W - off, pltpu.roll(x, shift=W - off, axis=2), 0.0)
        # ( 0, -off): value x[..., col-off], valid iff col >= off
        s = s + jnp.where(col >= off, pltpu.roll(x, shift=off, axis=2), 0.0)
        # (+off,  0): value x[..., row+off, :], valid iff row < H - off
        s = s + jnp.where(row < H - off, pltpu.roll(x, shift=H - off, axis=1), 0.0)
        # (-off,  0): value x[..., row-off, :], valid iff row >= off
        s = s + jnp.where(row >= off, pltpu.roll(x, shift=off, axis=1), 0.0)

    # Per-pixel number of in-bounds cross taps.  For 0-1 input:
    #   dilate(image) > 0      <=>  s > 0
    #   dilate(1 - image) > 0  <=>  s < count
    # and edge = (dilate(x) == dilate(1-x)) reduces to (s > 0) & (s < count)
    # because the both-false case is impossible (count >= 3 > 0).
    h_cnt = jnp.minimum(col, p) + jnp.minimum((W - 1) - col, p)   # (1, 1, W)
    v_cnt = jnp.minimum(row, p) + jnp.minimum((H - 1) - row, p)   # (1, H, 1)
    count = (h_cnt + v_cnt + 1).astype(jnp.float32)               # (1, H, W)

    out_ref[...] = ((s > 0.0) & (s < count)).astype(out_ref.dtype)


def _vmem_capacity_bytes():
    try:
        return int(pltpu.get_tpu_info().vmem_capacity_bytes)
    except Exception:
        return 64 * 1024 * 1024          # conservative: v7x per-TensorCore VMEM


def _num_tensorcores():
    try:
        kind = jax.devices()[0].device_kind.lower()
    except Exception:
        return 1
    return 2 if any(tag in kind for tag in ("v4", "v5p", "v7")) else 1


def _pick_batch_tile(B, H, W, in_itemsize, out_itemsize, vmem_bytes, num_tc):
    """Largest batch tile whose double-buffered in+out blocks fit the budget.
    Returns 0 if even a single image does not fit (caller falls back)."""
    per_img = 2 * H * W * (in_itemsize + out_itemsize)   # 2x in + 2x out, per image
    budget = min(vmem_bytes * 2 // 5, 48 << 20)          # <= ~40% of VMEM, <= 48 MiB
    if per_img > budget:
        return 0
    bt = max(1, min(B, budget // per_img))
    target = B
    if num_tc >= 2 and B >= 2:
        bt = max(1, min(bt, B // 2))                     # >= 2 grid steps for 2 TCs
        if B % 2 == 0:
            target = B // 2                              # prefer an even step count
    while target % bt:
        bt -= 1
    return bt


def _edge_xla(img, kernel_size, out_dtype):
    """Plain-XLA path for a single image too large for one VMEM block."""
    # TODO(synk): replace with an H-tiled Pallas kernel using 2p-row halo strips (manual DMA).
    p = kernel_size // 2
    x = img.astype(jnp.float32)
    B, H, W = x.shape
    xp = jnp.pad(x, ((0, 0), (p, p), (p, p)))
    s = x
    for off in range(1, p + 1):
        s = s + xp[:, p:p + H, p + off:p + off + W] + xp[:, p:p + H, p - off:p - off + W]
        s = s + xp[:, p + off:p + off + H, p:p + W] + xp[:, p - off:p - off + H, p:p + W]
    col = jnp.arange(W, dtype=jnp.int32)[None, None, :]
    row = jnp.arange(H, dtype=jnp.int32)[None, :, None]
    count = (jnp.minimum(col, p) + jnp.minimum(W - 1 - col, p)
             + jnp.minimum(row, p) + jnp.minimum(H - 1 - row, p) + 1).astype(jnp.float32)
    return ((s > 0.0) & (s < count)).astype(out_dtype)


def edge_generator_forward(x, kernel_size=3, out_dtype=jnp.float32):
    """Pallas equivalent of EdgeGenerator.forward (return_all=False path).

    Accepts a 0-1 input shaped (B, 1, H, W) (or (H, W) / (1, H, W) like the
    PyTorch module) and returns an edge map of shape (B, 1, H, W) in out_dtype.
    """
    assert kernel_size % 2 == 1, "Kernel size must be odd"
    x = jnp.asarray(x)
    if x.ndim == 2:
        x = x[None, None]
    elif x.ndim == 3:
        x = x[None]
    B, C, H, W = x.shape
    assert C == 1, "Image must be single channel"
    assert H > kernel_size and W > kernel_size, "Image must be larger than kernel size"

    # Keep the caller's (narrow) dtype in HBM; only bools get promoted.
    if x.dtype == jnp.bool_:
        x = x.astype(jnp.bfloat16)
    img = x[:, 0]                                   # (B, H, W); no pad, no (1-x) copy

    in_isz = jnp.dtype(img.dtype).itemsize
    out_isz = jnp.dtype(out_dtype).itemsize
    vmem = _vmem_capacity_bytes()
    num_tc = _num_tensorcores()
    bt = _pick_batch_tile(B, H, W, in_isz, out_isz, vmem, num_tc)
    if bt == 0:
        return _edge_xla(img, kernel_size, out_dtype)[:, None]

    needed = 2 * bt * H * W * (in_isz + out_isz)    # double-buffered in + out blocks
    vmem_limit = int(min(vmem * 3 // 4, max(2 * needed, 32 << 20)))

    kernel = functools.partial(_edge_kernel, k=kernel_size)
    out = pl.pallas_call(
        kernel,
        out_shape=jax.ShapeDtypeStruct((B, H, W), out_dtype),
        grid_spec=pltpu.PrefetchScalarGridSpec(
            num_scalar_prefetch=0,
            grid=(B // bt,),
            in_specs=[pl.BlockSpec((bt, H, W), lambda b: (b, 0, 0))],
            out_specs=pl.BlockSpec((bt, H, W), lambda b: (b, 0, 0)),
        ),
        compiler_params=pltpu.CompilerParams(
            dimension_semantics=("parallel",),
            vmem_limit_bytes=vmem_limit,
        ),
    )(img)
    return out[:, None]                             # (B, 1, H, W)


def _reference_forward(x, kernel_size=3):
    """Plain-JAX reference mirroring the PyTorch module (explicit two dilations,
    independent of the in-kernel tap-count reformulation) for validation."""
    x = jnp.asarray(x, jnp.float32)
    p = kernel_size // 2
    img = x[:, 0]

    def dilate(im):
        imp = jnp.pad(im, ((0, 0), (p, p), (p, p)))
        H, W = im.shape[1], im.shape[2]
        offs = [(p, j) for j in range(kernel_size)] + \
               [(i, p) for i in range(kernel_size) if i != p]
        s = sum(imp[:, dy:dy + H, dx:dx + W] for dy, dx in offs)
        return (s > 0).astype(jnp.float32)

    d_img = dilate(img)
    d_ers = dilate(1.0 - img)
    diff = -jnp.abs(d_ers - d_img) + 1.0
    return (diff > 0).astype(jnp.float32)[:, None]


if __name__ == "__main__":
    key = jax.random.PRNGKey(0)
    # Deterministic 0-1 mask, shape (B=2, C=1, H=16, W=16) -- module requires C == 1.
    x = (jax.random.uniform(key, (2, 1, 16, 16)) > 0.5).astype(jnp.float32)

    out = jax.block_until_ready(edge_generator_forward(x, kernel_size=3))
    ref = _reference_forward(x, kernel_size=3)
    assert out.shape == (2, 1, 16, 16)
    assert out.dtype == jnp.float32
    assert jnp.array_equal(out, ref), "Pallas output mismatch vs reference (k=3)"

    out5 = jax.block_until_ready(edge_generator_forward(x, kernel_size=5))
    ref5 = _reference_forward(x, kernel_size=5)
    assert jnp.array_equal(out5, ref5), "Pallas output mismatch vs reference (k=5)"

    # Narrow-dtype input path (bf16 in HBM) must give the same edge map.
    out_bf = jax.block_until_ready(
        edge_generator_forward(x.astype(jnp.bfloat16), kernel_size=3))
    assert jnp.array_equal(out_bf, ref), "Pallas output mismatch for bf16 input (k=3)"

    print("KERNEL_OK")
</pallas_src>

<mosaic_0001>
module attributes {stable_mosaic.version = 11 : i64} {
  func.func @_edge_kernel(%arg0: i32, %arg1: memref<2x16x16xf32, #tpu.memory_space<vmem>>, %arg2: memref<2x16x16xf32, #tpu.memory_space<vmem>>) attributes {dimension_semantics = [#tpu.dimension_semantics<parallel>], iteration_bounds = array<i64: 1>, scalar_prefetch = 0 : i64, scratch_operands = 0 : i64, tpu.core_type = #tpu.core_type<tc>, window_params = [{transform_indices = @transform_0, window_bounds = array<i64: 2, 16, 16>}, {transform_indices = @transform_1, window_bounds = array<i64: 2, 16, 16>}]} {
    %c0 = arith.constant 0 : index
    %c0_0 = arith.constant 0 : index
    %c0_1 = arith.constant 0 : index
    %0 = vector.load %arg1[%c0, %c0_0, %c0_1] : memref<2x16x16xf32, #tpu.memory_space<vmem>>, vector<2x16x16xf32>
    %1 = tpu.iota {dimensions = array<i32: 2>} : vector<1x1x16xi32>
    %2 = tpu.iota {dimensions = array<i32: 1>} : vector<1x16x1xi32>
    %c15_i32 = arith.constant 15 : i32
    %3 = vector.broadcast %c15_i32 : i32 to vector<1x1x16xi32>
    %4 = arith.cmpi slt, %1, %3 : vector<1x1x16xi32>
    %c15_i32_2 = arith.constant 15 : i32
    %5 = tpu.dynamic_rotate %0 by %c15_i32_2 dim 2 : vector<2x16x16xf32>, i32 -> vector<2x16x16xf32>
    %cst = arith.constant 0.000000e+00 : f32
    %6 = vector.shape_cast %4 : vector<1x1x16xi1> to vector<1x1x16xi1>
    %7 = vector.broadcast %6 : vector<1x1x16xi1> to vector<2x16x16xi1>
    %8 = vector.broadcast %cst : f32 to vector<2x16x16xf32>
    %9 = arith.select %7, %5, %8 : vector<2x16x16xi1>, vector<2x16x16xf32>
    %10 = arith.addf %0, %9 : vector<2x16x16xf32>
    %c1_i32 = arith.constant 1 : i32
    %11 = vector.broadcast %c1_i32 : i32 to vector<1x1x16xi32>
    %12 = arith.cmpi sge, %1, %11 : vector<1x1x16xi32>
    %c1_i32_3 = arith.constant 1 : i32
    %13 = tpu.dynamic_rotate %0 by %c1_i32_3 dim 2 : vector<2x16x16xf32>, i32 -> vector<2x16x16xf32>
    %cst_4 = arith.constant 0.000000e+00 : f32
    %14 = vector.shape_cast %12 : vector<1x1x16xi1> to vector<1x1x16xi1>
    %15 = vector.broadcast %14 : vector<1x1x16xi1> to vector<2x16x16xi1>
    %16 = vector.broadcast %cst_4 : f32 to vector<2x16x16xf32>
    %17 = arith.select %15, %13, %16 : vector<2x16x16xi1>, vector<2x16x16xf32>
    %18 = arith.addf %10, %17 : vector<2x16x16xf32>
    %c15_i32_5 = arith.constant 15 : i32
    %19 = vector.broadcast %c15_i32_5 : i32 to vector<1x16x1xi32>
    %20 = arith.cmpi slt, %2, %19 : vector<1x16x1xi32>
    %c15_i32_6 = arith.constant 15 : i32
    %21 = tpu.dynamic_rotate %0 by %c15_i32_6 dim 1 : vector<2x16x16xf32>, i32 -> vector<2x16x16xf32>
    %cst_7 = arith.constant 0.000000e+00 : f32
    %22 = vector.shape_cast %20 : vector<1x16x1xi1> to vector<1x16x1xi1>
    %23 = vector.broadcast %22 : vector<1x16x1xi1> to vector<2x16x16xi1>
    %24 = vector.broadcast %cst_7 : f32 to vector<2x16x16xf32>
    %25 = arith.select %23, %21, %24 : vector<2x16x16xi1>, vector<2x16x16xf32>
    %26 = arith.addf %18, %25 : vector<2x16x16xf32>
    %c1_i32_8 = arith.constant 1 : i32
    %27 = vector.broadcast %c1_i32_8 : i32 to vector<1x16x1xi32>
    %28 = arith.cmpi sge, %2, %27 : vector<1x16x1xi32>
    %c1_i32_9 = arith.constant 1 : i32
    %29 = tpu.dynamic_rotate %0 by %c1_i32_9 dim 1 : vector<2x16x16xf32>, i32 -> vector<2x16x16xf32>
    %cst_10 = arith.constant 0.000000e+00 : f32
    %30 = vector.shape_cast %28 : vector<1x16x1xi1> to vector<1x16x1xi1>
    %31 = vector.broadcast %30 : vector<1x16x1xi1> to vector<2x16x16xi1>
    %32 = vector.broadcast %cst_10 : f32 to vector<2x16x16xf32>
    %33 = arith.select %31, %29, %32 : vector<2x16x16xi1>, vector<2x16x16xf32>
    %34 = arith.addf %26, %33 : vector<2x16x16xf32>
    %c1_i32_11 = arith.constant 1 : i32
    %35 = vector.broadcast %c1_i32_11 : i32 to vector<1x1x16xi32>
    %36 = arith.minsi %1, %35 : vector<1x1x16xi32>
    %c15_i32_12 = arith.constant 15 : i32
    %37 = vector.broadcast %c15_i32_12 : i32 to vector<1x1x16xi32>
    %38 = arith.subi %37, %1 : vector<1x1x16xi32>
    %c1_i32_13 = arith.constant 1 : i32
    %39 = vector.broadcast %c1_i32_13 : i32 to vector<1x1x16xi32>
    %40 = arith.minsi %38, %39 : vector<1x1x16xi32>
    %41 = arith.addi %36, %40 : vector<1x1x16xi32>
    %c1_i32_14 = arith.constant 1 : i32
    %42 = vector.broadcast %c1_i32_14 : i32 to vector<1x16x1xi32>
    %43 = arith.minsi %2, %42 : vector<1x16x1xi32>
    %c15_i32_15 = arith.constant 15 : i32
    %44 = vector.broadcast %c15_i32_15 : i32 to vector<1x16x1xi32>
    %45 = arith.subi %44, %2 : vector<1x16x1xi32>
    %c1_i32_16 = arith.constant 1 : i32
    %46 = vector.broadcast %c1_i32_16 : i32 to vector<1x16x1xi32>
    %47 = arith.minsi %45, %46 : vector<1x16x1xi32>
    %48 = arith.addi %43, %47 : vector<1x16x1xi32>
    %49 = vector.broadcast %41 : vector<1x1x16xi32> to vector<1x16x16xi32>
    %50 = vector.broadcast %48 : vector<1x16x1xi32> to vector<1x16x16xi32>
    %51 = arith.addi %49, %50 : vector<1x16x16xi32>
    %c1_i32_17 = arith.constant 1 : i32
    %52 = vector.broadcast %c1_i32_17 : i32 to vector<1x16x16xi32>
    %53 = arith.addi %51, %52 : vector<1x16x16xi32>
    %54 = arith.sitofp %53 : vector<1x16x16xi32> to vector<1x16x16xf32>
    %cst_18 = arith.constant 0.000000e+00 : f32
    %55 = vector.broadcast %cst_18 : f32 to vector<2x16x16xf32>
    %56 = arith.cmpf ogt, %34, %55 : vector<2x16x16xf32>
    %57 = vector.broadcast %54 : vector<1x16x16xf32> to vector<2x16x16xf32>
    %58 = arith.cmpf olt, %34, %57 : vector<2x16x16xf32>
    %59 = arith.andi %56, %58 : vector<2x16x16xi1>
    %60 = arith.extui %59 : vector<2x16x16xi1> to vector<2x16x16xi32>
    %61 = arith.sitofp %60 : vector<2x16x16xi32> to vector<2x16x16xf32>
    %c0_19 = arith.constant 0 : index
    %c0_20 = arith.constant 0 : index
    %c0_21 = arith.constant 0 : index
    %62 = vector.load %arg2[%c0_19, %c0_20, %c0_21] : memref<2x16x16xf32, #tpu.memory_space<vmem>>, vector<2x16x16xf32>
    tpu.vector_store %arg2[%c0_19, %c0_20, %c0_21], %61 {strides = array<i32>} : memref<2x16x16xf32, #tpu.memory_space<vmem>>, vector<2x16x16xf32>,
    return
  }
  func.func @transform_0(%arg0: i32) -> (i32, i32, i32) {
    %c0_i32 = arith.constant 0 : i32
    %c0_i32_0 = arith.constant 0 : i32
    %c0_i32_1 = arith.constant 0 : i32
    return %arg0, %c0_i32, %c0_i32_0 : i32, i32, i32
  }
  func.func @transform_1(%arg0: i32) -> (i32, i32, i32) {
    %c0_i32 = arith.constant 0 : i32
    %c0_i32_0 = arith.constant 0 : i32
    %c0_i32_1 = arith.constant 0 : i32
    return %arg0, %c0_i32, %c0_i32_0 : i32, i32, i32
  }
}

</mosaic_0001>

<llo_original>
// kernel: tpu_custom_call.1
$region0: #{tpu_custom_call.1}
  #allocation0 [shape = 'u32[]', space=smem, size = 0x4, offset = 0x4, fixed_abs, tag = 'smem constant byte address 0x4 - core index']
  #allocation1 [shape = 'u32[72,128]{1,0:T(1,128)}', space=vmem, size = 0x9000, scoped, tag = 'internal scratch']
  %s0 = inlined_call_operand.hbm [shape: f32[2,16,16], index: 0, kind: input, shape index: {}]
  %s1 = inlined_call_operand.hbm [shape: f32[2,16,16], index: 1, kind: output, shape index: {}]
  %s2 = sld [smem:[#allocation0]]
  $region18: #{tpu_custom_call.1} parent=0
    _
  %s4 = ssub.s32 1, %s2
  %s5 = scalar_select 0, %s4, %s2
  $region1: #{tpu_custom_call.1} parent=0
    #allocation2 [shape = 'u8[16384]{0}', space=vmem, size = 0x4000, scoped, tag = 'input window, operand 0, single buffered']
    #allocation3 [shape = 's32[1]{0}', space=sflag, size = 0x4, scoped, tag = 'scoped memory for tpu_custom_call.1']
    #allocation4 [shape = 's32[1]{0}', space=sflag, size = 0x4, scoped, tag = 'scoped memory for tpu_custom_call.1']
    #allocation5 [shape = 'u8[16384]{0}', space=vmem, size = 0x4000, scoped, tag = 'output window, operand 0, single buffered']
    %6 = vsyncpa [#allocation3], 0
    %7 = vsyncpa [#allocation4], 0
    // Predicated region
    $region2: #{tpu_custom_call.1} parent=1 // pred_check
      _
    $region3: #{tpu_custom_call.1} parent=1 // pred_check_branch
      %9 = sbr.rel (0) target = $region5
    $region4: #{tpu_custom_call.1} parent=1 // pred_region
      %11 = vsyncadd [#allocation3], 0
      %s12 = sshll.u32 %s0, 4
      %s13 = int_to_ptr.hbm [resolvable:$true] %s12
      %s14 = sshll.u32 [#allocation2], 4
      %s15 = int_to_ptr.vmem [resolvable:$true] %s14
      %20 = dma.hbm_to_vmem [thread:$0]  %s13, 512, %s15, [#allocation3], 128, 128, 8
    $region5: #{tpu_custom_call.1} parent=1 // pred_fallthru
      _
    // Predicated region
    $region6: #{tpu_custom_call.1} parent=1 // pred_check
      _
    $region7: #{tpu_custom_call.1} parent=1 // pred_check_branch
      %22 = sbr.rel (0) target = $region9
    $region8: #{tpu_custom_call.1} parent=1 // pred_region
      %24 = dma.done [#allocation3], 512
    $region9: #{tpu_custom_call.1} parent=1 // pred_fallthru
      _
    %v25 = vld [vmem:[#allocation2] sm:$0xff]
    %v26 = vld [vmem:[#allocation2 + $0x8] sm:$0xff]
    %v27 = vld [vmem:[#allocation2 + $0x10] sm:$0xff]
    %v28 = vld [vmem:[#allocation2 + $0x18] sm:$0xff]
    %v29 = vlaneseq
    %v30 = vand.u32 %v29, 127
    %v31 = vlaneseq
    %v32 = vshrl.u32 %v31, 7
    %v33 = vadd.s32 %v32, 8
    %vm34 = vcmp.lt.s32.totalorder %v30, 15
    %vm35 = vcmask 1047680
    %36 = vrot.lane.b32.xlu0 %v25, 16
    %v37 = vpop.permute.xlu0 %36
    %v38 = vsel %vm35, %v37, %v25
    %39 = vrot.lane.b32.xlu0 %v26, 16
    %v40 = vpop.permute.xlu0 %39
    %v41 = vsel %vm35, %v40, %v26
    %42 = vrot.lane.b32.xlu0 %v27, 16
    %v43 = vpop.permute.xlu0 %42
    %v44 = vsel %vm35, %v43, %v27
    %45 = vrot.lane.b32.xlu0 %v28, 16
    %v46 = vpop.permute.xlu0 %45
    %v47 = vsel %vm35, %v46, %v28
    %48 = vrot.lane.b32.xlu0 %v38, 16
    %v49 = vpop.permute.xlu0 %48
    %50 = vrot.lane.b32.xlu0 %v41, 16
    %v51 = vpop.permute.xlu0 %50
    %52 = vrot.lane.b32.xlu0 %v44, 16
    %v53 = vpop.permute.xlu0 %52
    %54 = vrot.lane.b32.xlu0 %v47, 16
    %v55 = vpop.permute.xlu0 %54
    %v56 = vsel %vm35, %v49, %v25
    %v57 = vsel %vm35, %v51, %v26
    %v58 = vsel %vm35, %v53, %v27
    %v59 = vsel %vm35, %v55, %v28
    %v60 = vsel %vm34, 1, 0
    %vm61 = vcmp.eq.s32.totalorder %v60, 1
    %66 = vrot.lane.b32.xlu0 %v56, 127
    %v67 = vpop.permute.xlu0 %66
    %68 = vrot.lane.b32.xlu0 %v57, 127
    %v69 = vpop.permute.xlu0 %68
    %70 = vrot.lane.b32.xlu0 %v58, 127
    %v71 = vpop.permute.xlu0 %70
    %72 = vrot.lane.b32.xlu0 %v59, 127
    %v73 = vpop.permute.xlu0 %72
    %v78 = vsel %vm61, %v67, 0.0
    %v79 = vsel %vm61, %v69, 0.0
    %v80 = vsel %vm61, %v71, 0.0
    %v81 = vsel %vm61, %v73, 0.0
    %v82 = vadd.f32 %v25, %v78
    %v83 = vadd.f32 %v26, %v79
    %v84 = vadd.f32 %v27, %v80
    %v85 = vadd.f32 %v28, %v81
    %vm86 = vcmp.ge.s32.totalorder %v30, 1
    %v87 = vsel %vm86, 1, 0
    %vm88 = vcmp.eq.s32.totalorder %v87, 1
    %89 = vrot.lane.b32.xlu0 %v56, 113
    %v90 = vpop.permute.xlu0 %89
    %91 = vrot.lane.b32.xlu0 %v57, 113
    %v92 = vpop.permute.xlu0 %91
    %93 = vrot.lane.b32.xlu0 %v58, 113
    %v94 = vpop.permute.xlu0 %93
    %95 = vrot.lane.b32.xlu0 %v59, 113
    %v96 = vpop.permute.xlu0 %95
    %v101 = vsel %vm88, %v90, 0.0
    %v102 = vsel %vm88, %v92, 0.0
    %v103 = vsel %vm88, %v94, 0.0
    %v104 = vsel %vm88, %v96, 0.0
    %v105 = vadd.f32 %v82, %v101
    %v106 = vadd.f32 %v83, %v102
    %v107 = vadd.f32 %v84, %v103
    %v108 = vadd.f32 %v85, %v104
    %vm109 = vcmp.lt.s32.totalorder %v32, 15
    %vm110 = vcmp.lt.s32.totalorder %v33, 15
    %v111 = vrot.slane %v25, 1
    %v112 = vrot.slane %v27, 1
    %v113 = vrot.slane %v26, 1
    %v114 = vrot.slane %v28, 1
    %vm115 = vcmp.lt.s32.totalorder %v32, 7
    %v116 = vsel %vm115, %v111, %v113
    %v117 = vsel %vm115, %v112, %v114
    %v118 = vsel %vm115, %v113, %v111
    %v119 = vsel %vm115, %v114, %v112
    %v120 = vsel %vm109, 1, 0
    %v121 = vsel %vm110, 1, 0
    %vm122 = vcmp.eq.s32.totalorder %v120, 1
    %vm123 = vcmp.eq.s32.totalorder %v121, 1
    %v124 = vsel %vm122, %v116, 0.0
    %v125 = vsel %vm123, %v118, 0.0
    %v126 = vsel %vm122, %v117, 0.0
    %v127 = vsel %vm123, %v119, 0.0
    %v128 = vadd.f32 %v105, %v124
    %v129 = vadd.f32 %v106, %v125
    %v130 = vadd.f32 %v107, %v126
    %v131 = vadd.f32 %v108, %v127
    %vm132 = vcmp.ge.s32.totalorder %v32, 1
    %vm133 = vcmp.ge.s32.totalorder %v33, 1
    %v134 = vrot.slane %v25, 7
    %v135 = vrot.slane %v27, 7
    %v136 = vrot.slane %v26, 7
    %v137 = vrot.slane %v28, 7
    %vm138 = vcmp.lt.s32.totalorder %v32, 1
    %v139 = vsel %vm138, %v134, %v136
    %v140 = vsel %vm138, %v135, %v137
    %v141 = vsel %vm138, %v136, %v134
    %v142 = vsel %vm138, %v137, %v135
    %v143 = vsel %vm132, 1, 0
    %v144 = vsel %vm133, 1, 0
    %vm145 = vcmp.eq.s32.totalorder %v143, 1
    %vm146 = vcmp.eq.s32.totalorder %v144, 1
    %v147 = vsel %vm145, %v141, 0.0
    %v148 = vsel %vm146, %v139, 0.0
    %v149 = vsel %vm145, %v142, 0.0
    %v150 = vsel %vm146, %v140, 0.0
    %v151 = vadd.f32 %v128, %v147
    %v152 = vadd.f32 %v129, %v148
    %v153 = vadd.f32 %v130, %v149
    %v154 = vadd.f32 %v131, %v150
    %vm155 = vcmp.lt.s32.totalorder %v30, 1
    %v156 = vsel %vm155, %v30, 1
    %v157 = vsub.s32 15, %v30
    %vm158 = vcmp.lt.s32.totalorder %v157, 1
    %v159 = vsel %vm158, %v157, 1
    %v160 = vadd.s32 %v156, %v159
    %vm161 = vcmp.lt.s32.totalorder %v32, 1
    %v162 = vsel %vm161, %v32, 1
    %vm163 = vcmp.lt.s32.totalorder %v33, 1
    %v164 = vsel %vm163, %v33, 1
    %v165 = vsub.s32 15, %v32
    %v166 = vsub.s32 15, %v33
    %vm167 = vcmp.lt.s32.totalorder %v165, 1
    %v168 = vsel %vm167, %v165, 1
    %vm169 = vcmp.lt.s32.totalorder %v166, 1
    %v170 = vsel %vm169, %v166, 1
    %v171 = vadd.s32 %v162, %v168
    %v172 = vadd.s32 %v164, %v170
    %v173 = vadd.s32 %v160, %v171
    %v174 = vadd.s32 %v160, %v172
    %v175 = vadd.s32 %v173, 1
    %v176 = vadd.s32 %v174, 1
    %v177 = vcvt.s32.f32 %v175
    %v178 = vcvt.s32.f32 %v176
    %vm179 = vcmp.gt.f32.partialorder %v151, 0.0
    %vm180 = vcmp.gt.f32.partialorder %v152, 0.0
    %vm181 = vcmp.gt.f32.partialorder %v153, 0.0
    %vm182 = vcmp.gt.f32.partialorder %v154, 0.0
    %vm183 = vcmp.lt.f32.partialorder %v151, %v177
    %vm184 = vcmp.lt.f32.partialorder %v152, %v178
    %vm185 = vcmp.lt.f32.partialorder %v153, %v177
    %vm186 = vcmp.lt.f32.partialorder %v154, %v178
    %vm187 = vmand %vm179, %vm183
    %vm188 = vmand %vm180, %vm184
    %vm189 = vmand %vm181, %vm185
    %vm190 = vmand %vm182, %vm186
    %v191 = vsel %vm187, 1, 0
    %v192 = vsel %vm188, 1, 0
    %v193 = vsel %vm189, 1, 0
    %v194 = vsel %vm190, 1, 0
    %v195 = vcvt.s32.f32 %v191
    %v196 = vcvt.s32.f32 %v192
    %v197 = vcvt.s32.f32 %v193
    %v198 = vcvt.s32.f32 %v194
    %vm199 = vcmask 130048
    %200 = vst.msk [vmem:[#allocation5] sm:$0xff] %vm199, %v195
    %201 = vst.msk [vmem:[#allocation5 + $0x8] sm:$0xff] %vm199, %v196
    %202 = vst.msk [vmem:[#allocation5 + $0x10] sm:$0xff] %vm199, %v197
    %203 = vst.msk [vmem:[#allocation5 + $0x18] sm:$0xff] %vm199, %v198
    // Predicated region
    $region10: #{tpu_custom_call.1} parent=1 // pred_check
      _
    $region11: #{tpu_custom_call.1} parent=1 // pred_check_branch
      %205 = sbr.rel (0) target = $region13
    $region12: #{tpu_custom_call.1} parent=1 // pred_region
      %207 = vsyncadd [#allocation4], 0
      %s208 = sshll.u32 [#allocation5], 4
      %s209 = int_to_ptr.vmem [resolvable:$true] %s208
      %s210 = sshll.u32 %s1, 4
      %s211 = int_to_ptr.hbm [resolvable:$true] %s210
      %216 = dma.vmem_to_hbm [thread:$0]  %s209, 512, %s211, [#allocation4], 128, 128, 8
    $region13: #{tpu_custom_call.1} parent=1 // pred_fallthru
      _
    // Predicated region
    $region14: #{tpu_custom_call.1} parent=1 // pred_check
      _
    $region15: #{tpu_custom_call.1} parent=1 // pred_check_branch
      %218 = sbr.rel (0) target = $region17
    $region16: #{tpu_custom_call.1} parent=1 // pred_region
      %220 = dma.done [#allocation4], 512
    $region17: #{tpu_custom_call.1} parent=1 // pred_fallthru
      _
    %221 = vsyncpa [#allocation3], 1
    %222 = vsyncpa [#allocation4], 1

</llo_original>
